<compile_context>
chip_gen: v7x
topology: tpu7x:2x2x1
jax: 0.10.0
libtpu: 0.0.40
codegen_flags: <defaults>
</compile_context>

<pallas_src>
import jax
import jax.numpy as jnp
from jax.experimental import pallas as pl
from jax.experimental.pallas import tpu as pltpu


def _cgcnn_kernel(dst_ref, pre_ref, ea_ref, we_ref, x_ref, dw_ref, db_ref,
                  o_ref, acc_ref):
    n_nodes, feat = x_ref.shape          # (N, F)
    te = pre_ref.shape[0]                # edges per tile
    k = pl.program_id(0)

    @pl.when(k == 0)
    def _init():
        acc_ref[...] = jnp.zeros_like(acc_ref)

    # Fused gate/softplus pre-activation for this edge tile:
    #   streamed node part (already includes both biases, f32)
    # + bf16 MXU matmul of edge_attr against the fused (D, 2F) edge weight.
    pre = pre_ref[...] + jnp.dot(ea_ref[...], we_ref[...],
                                 preferred_element_type=jnp.float32)   # (TE, 2F) f32
    f_pre = pre[:, :feat]                                              # lin_f branch
    s_pre = pre[:, feat:]                                              # lin_s branch

    # sigmoid via EUP exp + approximate reciprocal (keeps the VALU free).
    gate = pl.reciprocal(1.0 + jnp.exp(-f_pre), approx=True)
    # numerically stable softplus.
    soft = jnp.maximum(s_pre, 0.0) + jnp.log(1.0 + jnp.exp(-jnp.abs(s_pre)))
    msg = gate * soft                                                  # (TE, F) f32

    # Scatter-add over destination nodes: one-hot mask built in-kernel from the
    # dst indices (no N*E matrix in HBM).  Padded edges have dst == n_nodes and
    # match no row, so they contribute nothing.
    node_ids = jax.lax.broadcasted_iota(jnp.int32, (n_nodes, te), 0)   # (N, TE)
    mask = (node_ids == dst_ref[...]).astype(jnp.float32)              # (N, TE)
    acc_ref[...] += jnp.dot(mask, msg, preferred_element_type=jnp.float32)

    @pl.when(k == pl.num_programs(0) - 1)
    def _finalize():
        h = jnp.maximum(x_ref[...] + acc_ref[...], 0.0)                # residual + ReLU
        # TODO(synk): Dropout is inference-mode identity (module.eval()).
        pooled = jnp.sum(h, axis=0, keepdims=True)                     # (1, F)
        # Linear(F, 1) as VPU multiply + lane reduce (no M=1 MXU matmul).
        o_ref[...] = jnp.sum(pooled * dw_ref[...], axis=1, keepdims=True) + db_ref[...]


def cgcnn_forward(x, edge_index, edge_attr, params, *, edge_tile=128):
    """Pallas forward matching CGCNNetL1Sum.forward (eval mode)."""
    n, f = x.shape
    e, d = edge_attr.shape
    src = edge_index[0].astype(jnp.int32)   # x_j (message source)
    dst = edge_index[1].astype(jnp.int32)   # x_i (message target / aggregation index)

    # Split the CGConv linears by input slice of z = [x_i, x_j, edge_attr] and
    # fuse lin_f / lin_s column-wise: output columns [0:F] -> gate, [F:2F] -> softplus.
    wf, ws = params["wf"], params["ws"]                                   # (F, 2F+D)
    w_dst = jnp.concatenate([wf[:, :f].T, ws[:, :f].T], axis=1)           # (F, 2F)
    w_src = jnp.concatenate([wf[:, f:2 * f].T, ws[:, f:2 * f].T], axis=1) # (F, 2F)
    w_edge = jnp.concatenate([wf[:, 2 * f:].T, ws[:, 2 * f:].T], axis=1)  # (D, 2F)
    b_fused = jnp.concatenate([params["bf"], params["bs"]]).reshape(1, 2 * f)

    # Per-node projections once (N rows), then per-edge gather+add.  This replaces
    # the (E, 2F+D) concat and shrinks the per-edge matmul K from 2F+D to D.
    p_dst = x @ w_dst                                                     # (N, 2F)
    p_src = x @ w_src                                                     # (N, 2F)
    pre_node = (p_dst[dst] + p_src[src] + b_fused).astype(jnp.float32)    # (E, 2F)

    # Pad the edge axis to a multiple of the tile; padded edges get dst == n
    # so the in-kernel one-hot mask drops them.
    e_pad = ((e + edge_tile - 1) // edge_tile) * edge_tile
    pad = e_pad - e
    pre_node = jnp.pad(pre_node, ((0, pad), (0, 0)))
    ea = jnp.pad(edge_attr, ((0, pad), (0, 0))).astype(jnp.bfloat16)      # bf16 MXU operand
    dst_p = jnp.pad(dst, (0, pad), constant_values=n).reshape(1, e_pad)
    n_tiles = e_pad // edge_tile

    dw = params["dw"].reshape(1, f).astype(jnp.float32)
    db = params["db"].reshape(1, 1).astype(jnp.float32)

    grid_spec = pltpu.PrefetchScalarGridSpec(
        num_scalar_prefetch=0,
        grid=(n_tiles,),
        in_specs=[
            # per-edge-tile streamed inputs (double-buffered by the pipeline)
            pl.BlockSpec((1, edge_tile), lambda k: (0, k)),        # dst indices
            pl.BlockSpec((edge_tile, 2 * f), lambda k: (k, 0)),    # node pre-activation (f32)
            pl.BlockSpec((edge_tile, d), lambda k: (k, 0)),        # edge_attr (bf16)
            # VMEM-resident across the whole grid (constant index maps)
            pl.BlockSpec((d, 2 * f), lambda k: (0, 0)),            # fused edge weight (bf16)
            pl.BlockSpec((n, f), lambda k: (0, 0)),                # x (residual)
            pl.BlockSpec((1, f), lambda k: (0, 0)),                # dense weight row
            pl.BlockSpec((1, 1), lambda k: (0, 0)),                # dense bias
        ],
        out_specs=pl.BlockSpec((1, 1), lambda k: (0, 0)),
        scratch_shapes=[pltpu.VMEM((n, f), jnp.float32)],          # (N, F) accumulator
    )

    out = pl.pallas_call(
        _cgcnn_kernel,
        out_shape=jax.ShapeDtypeStruct((1, 1), jnp.float32),
        grid_spec=grid_spec,
        compiler_params=pltpu.CompilerParams(
            # single grid axis is the edge reduction -> "arbitrary".
            # (A "parallel" node/graph axis for v7x dual-TC would need either
            #  multiple graphs or edge bucketing per node tile.)
            dimension_semantics=("arbitrary",),
            vmem_limit_bytes=32 * 1024 * 1024,   # safe on v5e/v6e/v7x
        ),
    )(dst_p, pre_node, ea, w_edge.astype(jnp.bfloat16), x, dw, db)
    return out[0]                                # shape (1,), like Linear(F,1) output


def reference_forward(x, edge_index, edge_attr, params):
    """Pure-JAX f32 reference of the PyTorch module (eval mode)."""
    src, dst = edge_index[0], edge_index[1]
    z = jnp.concatenate([x[dst], x[src], edge_attr], axis=-1)
    gate = jax.nn.sigmoid(z @ params["wf"].T + params["bf"])
    soft = jax.nn.softplus(z @ params["ws"].T + params["bs"])
    msg = gate * soft
    agg = jnp.zeros_like(x).at[dst].add(msg)
    h = jax.nn.relu(x + agg)
    pooled = jnp.sum(h, axis=0)
    return pooled @ params["dw"].T + params["db"]


if __name__ == "__main__":
    # Small synthetic graph: N nodes, E edges, F node features, D edge features.
    N, E, F, D = 64, 200, 32, 16
    Z = 2 * F + D

    key = jax.random.PRNGKey(0)
    k_x, k_ea, k_src, k_dst, k_wf, k_bf, k_ws, k_bs, k_dw, k_db = jax.random.split(key, 10)

    x = jax.random.normal(k_x, (N, F), dtype=jnp.float32)
    edge_attr = jax.random.normal(k_ea, (E, D), dtype=jnp.float32)
    edge_index = jnp.stack([
        jax.random.randint(k_src, (E,), 0, N),
        jax.random.randint(k_dst, (E,), 0, N),
    ])  # (2, E) -- PyG convention: row 0 = source, row 1 = target

    params = {
        # CGConv lin_f / lin_s : Linear(2F+D, F)
        "wf": 0.1 * jax.random.normal(k_wf, (F, Z), dtype=jnp.float32),
        "bf": 0.1 * jax.random.normal(k_bf, (F,), dtype=jnp.float32),
        "ws": 0.1 * jax.random.normal(k_ws, (F, Z), dtype=jnp.float32),
        "bs": 0.1 * jax.random.normal(k_bs, (F,), dtype=jnp.float32),
        # dense : Linear(F, 1)
        "dw": 0.1 * jax.random.normal(k_dw, (1, F), dtype=jnp.float32),
        "db": 0.1 * jax.random.normal(k_db, (1,), dtype=jnp.float32),
    }

    out = jax.block_until_ready(cgcnn_forward(x, edge_index, edge_attr, params))
    ref = jax.block_until_ready(reference_forward(x, edge_index, edge_attr, params))

    assert out.shape == (1,), out.shape
    # bf16 MXU operands on the edge matmul + EUP approx reciprocal in the sigmoid
    # -> compare against the f32 reference with a correspondingly loosened tolerance.
    assert jnp.allclose(out, ref, rtol=2e-2, atol=1e-1), (out, ref)
    print("KERNEL_OK")
</pallas_src>

<mosaic_0001>
module attributes {stable_mosaic.version = 11 : i64} {
  func.func @_cgcnn_kernel(%arg0: i32, %arg1: memref<1x128xi32, #tpu.memory_space<vmem>>, %arg2: memref<128x64xf32, #tpu.memory_space<vmem>>, %arg3: memref<128x16xbf16, #tpu.memory_space<vmem>>, %arg4: memref<16x64xbf16, #tpu.memory_space<vmem>>, %arg5: memref<64x32xf32, #tpu.memory_space<vmem>>, %arg6: memref<1x32xf32, #tpu.memory_space<vmem>>, %arg7: memref<1x1xf32, #tpu.memory_space<vmem>>, %arg8: memref<1x1xf32, #tpu.memory_space<vmem>>, %arg9: memref<64x32xf32, #tpu.memory_space<vmem>>) attributes {dimension_semantics = [#tpu.dimension_semantics<arbitrary>], iteration_bounds = array<i64: 2>, scalar_prefetch = 0 : i64, scratch_operands = 1 : i64, tpu.core_type = #tpu.core_type<tc>, window_params = [{transform_indices = @transform_0, window_bounds = array<i64: 1, 128>}, {transform_indices = @transform_1, window_bounds = array<i64: 128, 64>}, {transform_indices = @transform_2, window_bounds = array<i64: 128, 16>}, {pipeline_mode = #tpu.pipeline_mode<synchronous>, transform_indices = @transform_3, window_bounds = array<i64: 16, 64>}, {pipeline_mode = #tpu.pipeline_mode<synchronous>, transform_indices = @transform_4, window_bounds = array<i64: 64, 32>}, {pipeline_mode = #tpu.pipeline_mode<synchronous>, transform_indices = @transform_5, window_bounds = array<i64: 1, 32>}, {pipeline_mode = #tpu.pipeline_mode<synchronous>, transform_indices = @transform_6, window_bounds = array<i64: 1, 1>}, {pipeline_mode = #tpu.pipeline_mode<synchronous>, transform_indices = @transform_7, window_bounds = array<i64: 1, 1>}]} {
    %c0_i32 = arith.constant 0 : i32
    %0 = arith.cmpi eq, %arg0, %c0_i32 : i32
    %1 = arith.extui %0 : i1 to i32
    %c0_i32_0 = arith.constant 0 : i32
    %2 = arith.cmpi ne, %1, %c0_i32_0 : i32
    scf.if %2 {
      %cst_19 = arith.constant 0.000000e+00 : f32
      %40 = vector.broadcast %cst_19 : f32 to vector<64x32xf32>
      %c0_20 = arith.constant 0 : index
      %c0_21 = arith.constant 0 : index
      %41 = vector.load %arg9[%c0_20, %c0_21] : memref<64x32xf32, #tpu.memory_space<vmem>>, vector<64x32xf32>
      tpu.vector_store %arg9[%c0_20, %c0_21], %40 {strides = array<i32>} : memref<64x32xf32, #tpu.memory_space<vmem>>, vector<64x32xf32>,
    } else {
    }
    %c0 = arith.constant 0 : index
    %c0_1 = arith.constant 0 : index
    %3 = vector.load %arg2[%c0, %c0_1] : memref<128x64xf32, #tpu.memory_space<vmem>>, vector<128x64xf32>
    %c0_2 = arith.constant 0 : index
    %c0_3 = arith.constant 0 : index
    %4 = vector.load %arg3[%c0_2, %c0_3] : memref<128x16xbf16, #tpu.memory_space<vmem>>, vector<128x16xbf16>
    %c0_4 = arith.constant 0 : index
    %c0_5 = arith.constant 0 : index
    %5 = vector.load %arg4[%c0_4, %c0_5] : memref<16x64xbf16, #tpu.memory_space<vmem>>, vector<16x64xbf16>
    %cst = arith.constant dense<0.000000e+00> : vector<128x64xf32>
    %6 = tpu.matmul %4, %5, %cst {dimension_numbers = #tpu.dot_dimension_numbers<[1], [0], [0], [1], [0, 0, 1, 1], [], []>} : vector<128x16xbf16>, vector<16x64xbf16>, vector<128x64xf32> -> vector<128x64xf32>
    %7 = arith.addf %3, %6 : vector<128x64xf32>
    %8 = vector.extract_strided_slice %7 {offsets = [0, 0], sizes = [128, 32], strides = [1, 1]} : vector<128x64xf32> to vector<128x32xf32>
    %9 = vector.extract_strided_slice %7 {offsets = [0, 32], sizes = [128, 32], strides = [1, 1]} : vector<128x64xf32> to vector<128x32xf32>
    %cst_6 = arith.constant 0.000000e+00 : f32
    %10 = vector.broadcast %cst_6 : f32 to vector<128x32xf32>
    %11 = arith.subf %10, %8 : vector<128x32xf32>
    %12 = math.exp %11 : vector<128x32xf32>
    %cst_7 = arith.constant 1.000000e+00 : f32
    %13 = vector.broadcast %cst_7 : f32 to vector<128x32xf32>
    %14 = arith.addf %13, %12 : vector<128x32xf32>
    %15 = tpu.reciprocal %14 {approx = true} : vector<128x32xf32> -> vector<128x32xf32>
    %cst_8 = arith.constant 0.000000e+00 : f32
    %16 = vector.broadcast %cst_8 : f32 to vector<128x32xf32>
    %17 = arith.maximumf %9, %16 : vector<128x32xf32>
    %18 = math.absf %9 : vector<128x32xf32>
    %cst_9 = arith.constant 0.000000e+00 : f32
    %19 = vector.broadcast %cst_9 : f32 to vector<128x32xf32>
    %20 = arith.subf %19, %18 : vector<128x32xf32>
    %21 = math.exp %20 : vector<128x32xf32>
    %cst_10 = arith.constant 1.000000e+00 : f32
    %22 = vector.broadcast %cst_10 : f32 to vector<128x32xf32>
    %23 = arith.addf %22, %21 : vector<128x32xf32>
    %24 = math.log %23 : vector<128x32xf32>
    %25 = arith.addf %17, %24 : vector<128x32xf32>
    %26 = arith.mulf %15, %25 : vector<128x32xf32>
    %27 = tpu.iota {dimensions = array<i32: 0>} : vector<64x128xi32>
    %c0_11 = arith.constant 0 : index
    %c0_12 = arith.constant 0 : index
    %28 = vector.load %arg1[%c0_11, %c0_12] : memref<1x128xi32, #tpu.memory_space<vmem>>, vector<1x128xi32>
    %29 = vector.broadcast %28 : vector<1x128xi32> to vector<64x128xi32>
    %30 = arith.cmpi eq, %27, %29 : vector<64x128xi32>
    %31 = arith.extui %30 : vector<64x128xi1> to vector<64x128xi32>
    %32 = arith.sitofp %31 : vector<64x128xi32> to vector<64x128xf32>
    %c0_13 = arith.constant 0 : index
    %c0_14 = arith.constant 0 : index
    %33 = vector.load %arg9[%c0_13, %c0_14] : memref<64x32xf32, #tpu.memory_space<vmem>>, vector<64x32xf32>
    %cst_15 = arith.constant dense<0.000000e+00> : vector<64x32xf32>
    %34 = tpu.matmul %32, %26, %cst_15 {dimension_numbers = #tpu.dot_dimension_numbers<[1], [0], [0], [1], [0, 0, 1, 1], [], []>} : vector<64x128xf32>, vector<128x32xf32>, vector<64x32xf32> -> vector<64x32xf32>
    %35 = arith.addf %33, %34 : vector<64x32xf32>
    %c0_16 = arith.constant 0 : index
    %c0_17 = arith.constant 0 : index
    %36 = vector.load %arg9[%c0_16, %c0_17] : memref<64x32xf32, #tpu.memory_space<vmem>>, vector<64x32xf32>
    tpu.vector_store %arg9[%c0_16, %c0_17], %35 {strides = array<i32>} : memref<64x32xf32, #tpu.memory_space<vmem>>, vector<64x32xf32>,
    %c1_i32 = arith.constant 1 : i32
    %37 = arith.cmpi eq, %arg0, %c1_i32 : i32
    %38 = arith.extui %37 : i1 to i32
    %c0_i32_18 = arith.constant 0 : i32
    %39 = arith.cmpi ne, %38, %c0_i32_18 : i32
    scf.if %39 {
      %c0_19 = arith.constant 0 : index
      %c0_20 = arith.constant 0 : index
      %40 = vector.load %arg5[%c0_19, %c0_20] : memref<64x32xf32, #tpu.memory_space<vmem>>, vector<64x32xf32>
      %c0_21 = arith.constant 0 : index
      %c0_22 = arith.constant 0 : index
      %41 = vector.load %arg9[%c0_21, %c0_22] : memref<64x32xf32, #tpu.memory_space<vmem>>, vector<64x32xf32>
      %42 = arith.addf %40, %41 : vector<64x32xf32>
      %cst_23 = arith.constant 0.000000e+00 : f32
      %43 = vector.broadcast %cst_23 : f32 to vector<64x32xf32>
      %44 = arith.maximumf %42, %43 : vector<64x32xf32>
      %cst_24 = arith.constant dense<0.000000e+00> : vector<32xf32>
      %45 = vector.multi_reduction <add>, %44, %cst_24 [0] : vector<64x32xf32> to vector<32xf32>
      %46 = vector.shape_cast %45 : vector<32xf32> to vector<1x32xf32>
      %c0_25 = arith.constant 0 : index
      %c0_26 = arith.constant 0 : index
      %47 = vector.load %arg6[%c0_25, %c0_26] : memref<1x32xf32, #tpu.memory_space<vmem>>, vector<1x32xf32>
      %48 = arith.mulf %46, %47 : vector<1x32xf32>
      %cst_27 = arith.constant dense<0.000000e+00> : vector<1xf32>
      %49 = vector.multi_reduction <add>, %48, %cst_27 [1] : vector<1x32xf32> to vector<1xf32>
      %50 = vector.shape_cast %49 : vector<1xf32> to vector<1x1xf32>
      %c0_28 = arith.constant 0 : index
      %c0_29 = arith.constant 0 : index
      %51 = vector.load %arg7[%c0_28, %c0_29] : memref<1x1xf32, #tpu.memory_space<vmem>>, vector<1x1xf32>
      %52 = arith.addf %50, %51 : vector<1x1xf32>
      %c0_30 = arith.constant 0 : index
      %c0_31 = arith.constant 0 : index
      %53 = vector.load %arg8[%c0_30, %c0_31] : memref<1x1xf32, #tpu.memory_space<vmem>>, vector<1x1xf32>
      tpu.vector_store %arg8[%c0_30, %c0_31], %52 {strides = array<i32>} : memref<1x1xf32, #tpu.memory_space<vmem>>, vector<1x1xf32>,
    } else {
    }
    return
  }
  func.func @transform_0(%arg0: i32) -> (i32, i32) {
    %c0_i32 = arith.constant 0 : i32
    %c0_i32_0 = arith.constant 0 : i32
    return %c0_i32, %arg0 : i32, i32
  }
  func.func @transform_1(%arg0: i32) -> (i32, i32) {
    %c0_i32 = arith.constant 0 : i32
    %c0_i32_0 = arith.constant 0 : i32
    return %arg0, %c0_i32 : i32, i32
  }
  func.func @transform_2(%arg0: i32) -> (i32, i32) {
    %c0_i32 = arith.constant 0 : i32
    %c0_i32_0 = arith.constant 0 : i32
    return %arg0, %c0_i32 : i32, i32
  }
  func.func @transform_3(%arg0: i32) -> (i32, i32) {
    %c0_i32 = arith.constant 0 : i32
    %c0_i32_0 = arith.constant 0 : i32
    %c0_i32_1 = arith.constant 0 : i32
    return %c0_i32, %c0_i32_0 : i32, i32
  }
  func.func @transform_4(%arg0: i32) -> (i32, i32) {
    %c0_i32 = arith.constant 0 : i32
    %c0_i32_0 = arith.constant 0 : i32
    %c0_i32_1 = arith.constant 0 : i32
    return %c0_i32, %c0_i32_0 : i32, i32
  }
  func.func @transform_5(%arg0: i32) -> (i32, i32) {
    %c0_i32 = arith.constant 0 : i32
    %c0_i32_0 = arith.constant 0 : i32
    %c0_i32_1 = arith.constant 0 : i32
    return %c0_i32, %c0_i32_0 : i32, i32
  }
  func.func @transform_6(%arg0: i32) -> (i32, i32) {
    %c0_i32 = arith.constant 0 : i32
    %c0_i32_0 = arith.constant 0 : i32
    %c0_i32_1 = arith.constant 0 : i32
    return %c0_i32, %c0_i32_0 : i32, i32
  }
  func.func @transform_7(%arg0: i32) -> (i32, i32) {
    %c0_i32 = arith.constant 0 : i32
    %c0_i32_0 = arith.constant 0 : i32
    %c0_i32_1 = arith.constant 0 : i32
    return %c0_i32, %c0_i32_0 : i32, i32
  }
}

</mosaic_0001>

<llo_original>
// kernel: tpu_custom_call.1
$region0: #{tpu_custom_call.1}
  #allocation0 [shape = 'u32[]', space=smem, size = 0x4, offset = 0x4, fixed_abs, tag = 'smem constant byte address 0x4 - core index']
  #allocation1 [shape = 'u32[144,128]{1,0:T(1,128)}', space=vmem, size = 0x12000, scoped, tag = 'internal scratch']
  #allocation2 [shape = 'f32[64,32]{1,0:T(8,128)}', space=vmem, size = 0x8000, scoped, tag = 'scratch operand']
  #allocation3 [shape = 'f32[1,1]{1,0:T(1,128)S(1)}', space=vmem, size = 0x200, scoped, tag = 'scoped memory for tpu_custom_call.1']
  %s0 = inlined_call_operand.vmem [shape: s32[1,256], index: 0, kind: input, shape index: {}]
  %s1 = inlined_call_operand.vmem [shape: f32[256,64], index: 1, kind: input, shape index: {}]
  %s2 = inlined_call_operand.vmem [shape: bf16[256,16], index: 2, kind: input, shape index: {}]
  %s3 = inlined_call_operand.vmem [shape: bf16[16,64], index: 3, kind: input, shape index: {}]
  %s4 = inlined_call_operand.vmem [shape: f32[64,32], index: 4, kind: input, shape index: {}]
  %s5 = inlined_call_operand.vmem [shape: f32[1,32], index: 5, kind: input, shape index: {}]
  %s6 = inlined_call_operand.<no memory space> [shape: f32[1,1], index: 6, kind: input, shape index: {}]
  %s7 = inlined_call_operand.hbm [shape: f32[1,1], index: 7, kind: output, shape index: {}]
  %s8 = sld [smem:[#allocation0]]
  $region69: #{tpu_custom_call.1} parent=0
    _
  %s10 = ssub.s32 1, %s8
  %s11 = scalar_select 0, %s10, %s8
  %v12 = vstv %s6
  %13 = vst [vmem:[#allocation3] sm:$0x1] %v12
  $region1: #{tpu_custom_call.1} parent=0
    #allocation4 [shape = 'u8[512]{0}', space=vmem, size = 0x400, scoped, tag = 'output window, operand 0, single buffered']
    #allocation5 [shape = 's32[2]{0}', space=sflag, size = 0x8, scoped, tag = 'scoped memory for tpu_custom_call.1']
    %14 = vsyncpa [#allocation5], 0
    loop: start=0, step=1, limit=4
    $region2: #{tpu_custom_call.1} parent=1 // loop_pre_header
      _
    $region3: #{tpu_custom_call.1} parent=1 // loop_header
      %s16 = sphi 0, %s20
      %p17 = scmp.ge.s32.totalorder %s16, 4
      %s26 = sphi 0, %s28
      %s29 = sphi 0, %s26
      %s30 = sphi 0, %s29
      %s46 = sphi 0, %s30
      %s52 = sphi 0, %s54
      %s55 = sphi 0, %s52
      %s56 = sphi 0, %s55
      %s72 = sphi 0, %s56
      %s78 = sphi 0, %s80
      %s81 = sphi 0, %s78
      %s82 = sphi 0, %s81
      %s98 = sphi 0, %s82
      %s102 = sphi 0, %s102
      %s104 = sphi 0, %s102
      %s105 = sphi 0, %s104
      %s119 = sphi 0, %s105
      %s123 = sphi 0, %s123
      %s125 = sphi 0, %s123
      %s126 = sphi 0, %s125
      %s140 = sphi 0, %s126
      %s144 = sphi 0, %s144
      %s146 = sphi 0, %s144
      %s147 = sphi 0, %s146
      %s161 = sphi 0, %s147
      %s165 = sphi 0, %s165
      %s167 = sphi 0, %s165
      %s168 = sphi 0, %s167
      %s182 = sphi 0, %s168
      %s186 = sphi 0, %s186
      %s188 = sphi 0, %s186
      %s189 = sphi 0, %s188
      %s203 = sphi 0, %s189
    $region4: #{tpu_custom_call.1} parent=1 // loop_header_branch
      %19 = sbr.rel (%p17) target = $region8
    $region5: #{tpu_custom_call.1} parent=1 // loop_body
      %s21 = ssub.s32 %s16, 1
      %s22 = ssub.s32 %s16, 2
      %s23 = sadd.s32 %s16, 1
      %s24 = ssub.s32 %s16, %s23
      %p25 = scmp.eq.s32.totalorder %s24, 0
      %s27 = sadd.s32 %s26, 1
      %s28 = scalar_select %p25, %s26, %s27
      %p31 = pneg %p25
      %p32 = scmp.eq.s32.totalorder %s16, 1
      %p33 = por %p31, %p32
      %p34 = scmp.ne.s32.totalorder %s26, %s29
      %p35 = scmp.eq.s32.totalorder %s16, 0
      %p36 = por %p34, %p35
      %p37 = scmp.ne.s32.totalorder %s26, %s29
      %p38 = scmp.eq.s32.totalorder %s21, 1
      %p39 = por %p37, %p38
      %p40 = scmp.ne.s32.totalorder %s29, %s30
      %p41 = scmp.eq.s32.totalorder %s21, 0
      %p42 = por %p40, %p41
      %p43 = scmp.ne.s32.totalorder %s29, %s30
      %p44 = scmp.eq.s32.totalorder %s22, 1
      %p45 = por %p43, %p44
      %p47 = scmp.ne.s32.totalorder %s30, %s46
      %p48 = scmp.eq.s32.totalorder %s22, 0
      %p49 = por %p47, %p48
      %s50 = ssub.s32 %s16, %s23
      %p51 = scmp.eq.s32.totalorder %s50, 0
      %s53 = sadd.s32 %s52, 1
      %s54 = scalar_select %p51, %s52, %s53
      %p57 = pneg %p51
      %p58 = scmp.eq.s32.totalorder %s16, 1
      %p59 = por %p57, %p58
      %p60 = scmp.ne.s32.totalorder %s52, %s55
      %p61 = scmp.eq.s32.totalorder %s16, 0
      %p62 = por %p60, %p61
      %p63 = scmp.ne.s32.totalorder %s52, %s55
      %p64 = scmp.eq.s32.totalorder %s21, 1
      %p65 = por %p63, %p64
      %p66 = scmp.ne.s32.totalorder %s55, %s56
      %p67 = scmp.eq.s32.totalorder %s21, 0
      %p68 = por %p66, %p67
      %p69 = scmp.ne.s32.totalorder %s55, %s56
      %p70 = scmp.eq.s32.totalorder %s22, 1
      %p71 = por %p69, %p70
      %p73 = scmp.ne.s32.totalorder %s56, %s72
      %p74 = scmp.eq.s32.totalorder %s22, 0
      %p75 = por %p73, %p74
      %s76 = ssub.s32 %s16, %s23
      %p77 = scmp.eq.s32.totalorder %s76, 0
      %s79 = sadd.s32 %s78, 1
      %s80 = scalar_select %p77, %s78, %s79
      %p83 = pneg %p77
      %p84 = scmp.eq.s32.totalorder %s16, 1
      %p85 = por %p83, %p84
      %p86 = scmp.ne.s32.totalorder %s78, %s81
      %p87 = scmp.eq.s32.totalorder %s16, 0
      %p88 = por %p86, %p87
      %p89 = scmp.ne.s32.totalorder %s78, %s81
      %p90 = scmp.eq.s32.totalorder %s21, 1
      %p91 = por %p89, %p90
      %p92 = scmp.ne.s32.totalorder %s81, %s82
      %p93 = scmp.eq.s32.totalorder %s21, 0
      %p94 = por %p92, %p93
      %p95 = scmp.ne.s32.totalorder %s81, %s82
      %p96 = scmp.eq.s32.totalorder %s22, 1
      %p97 = por %p95, %p96
      %p99 = scmp.ne.s32.totalorder %s82, %s98
      %p100 = scmp.eq.s32.totalorder %s22, 0
      %p101 = por %p99, %p100
      %s103 = sadd.s32 %s102, 1
      %p106 = scmp.eq.s32.totalorder %s16, 1
      %p107 = scmp.ne.s32.totalorder %s102, %s104
      %p108 = scmp.eq.s32.totalorder %s16, 0
      %p109 = por %p107, %p108
      %p110 = scmp.ne.s32.totalorder %s102, %s104
      %p111 = scmp.eq.s32.totalorder %s21, 1
      %p112 = por %p110, %p111
      %p113 = scmp.ne.s32.totalorder %s104, %s105
      %p114 = scmp.eq.s32.totalorder %s21, 0
      %p115 = por %p113, %p114
      %p116 = scmp.ne.s32.totalorder %s104, %s105
      %p117 = scmp.eq.s32.totalorder %s22, 1
      %p118 = por %p116, %p117
      %p120 = scmp.ne.s32.totalorder %s105, %s119
      %p121 = scmp.eq.s32.totalorder %s22, 0
      %p122 = por %p120, %p121
      %s124 = sadd.s32 %s123, 1
      %p127 = scmp.eq.s32.totalorder %s16, 1
      %p128 = scmp.ne.s32.totalorder %s123, %s125
      %p129 = scmp.eq.s32.totalorder %s16, 0
      %p130 = por %p128, %p129
      %p131 = scmp.ne.s32.totalorder %s123, %s125
      %p132 = scmp.eq.s32.totalorder %s21, 1
      %p133 = por %p131, %p132
      %p134 = scmp.ne.s32.totalorder %s125, %s126
      %p135 = scmp.eq.s32.totalorder %s21, 0
      %p136 = por %p134, %p135
      %p137 = scmp.ne.s32.totalorder %s125, %s126
      %p138 = scmp.eq.s32.totalorder %s22, 1
      %p139 = por %p137, %p138
      %p141 = scmp.ne.s32.totalorder %s126, %s140
      %p142 = scmp.eq.s32.totalorder %s22, 0
      %p143 = por %p141, %p142
      %s145 = sadd.s32 %s144, 1
      %p148 = scmp.eq.s32.totalorder %s16, 1
      %p149 = scmp.ne.s32.totalorder %s144, %s146
      %p150 = scmp.eq.s32.totalorder %s16, 0
      %p151 = por %p149, %p150
      %p152 = scmp.ne.s32.totalorder %s144, %s146
      %p153 = scmp.eq.s32.totalorder %s21, 1
      %p154 = por %p152, %p153
      %p155 = scmp.ne.s32.totalorder %s146, %s147
      %p156 = scmp.eq.s32.totalorder %s21, 0
      %p157 = por %p155, %p156
      %p158 = scmp.ne.s32.totalorder %s146, %s147
      %p159 = scmp.eq.s32.totalorder %s22, 1
      %p160 = por %p158, %p159
      %p162 = scmp.ne.s32.totalorder %s147, %s161
      %p163 = scmp.eq.s32.totalorder %s22, 0
      %p164 = por %p162, %p163
      %s166 = sadd.s32 %s165, 1
      %p169 = scmp.eq.s32.totalorder %s16, 1
      %p170 = scmp.ne.s32.totalorder %s165, %s167
      %p171 = scmp.eq.s32.totalorder %s16, 0
      %p172 = por %p170, %p171
      %p173 = scmp.ne.s32.totalorder %s165, %s167
      %p174 = scmp.eq.s32.totalorder %s21, 1
      %p175 = por %p173, %p174
      %p176 = scmp.ne.s32.totalorder %s167, %s168
      %p177 = scmp.eq.s32.totalorder %s21, 0
      %p178 = por %p176, %p177
      %p179 = scmp.ne.s32.totalorder %s167, %s168
      %p180 = scmp.eq.s32.totalorder %s22, 1
      %p181 = por %p179, %p180
      %p183 = scmp.ne.s32.totalorder %s168, %s182
      %p184 = scmp.eq.s32.totalorder %s22, 0
      %p185 = por %p183, %p184
      %s187 = sadd.s32 %s186, 1
      %p190 = scmp.eq.s32.totalorder %s16, 1
      %p191 = scmp.ne.s32.totalorder %s186, %s188
      %p192 = scmp.eq.s32.totalorder %s16, 0
      %p193 = por %p191, %p192
      %p194 = scmp.ne.s32.totalorder %s186, %s188
      %p195 = scmp.eq.s32.totalorder %s21, 1
      %p196 = por %p194, %p195
      %p197 = scmp.ne.s32.totalorder %s188, %s189
      %p198 = scmp.eq.s32.totalorder %s21, 0
      %p199 = por %p197, %p198
      %p200 = scmp.ne.s32.totalorder %s188, %s189
      %p201 = scmp.eq.s32.totalorder %s22, 1
      %p202 = por %p200, %p201
      %p204 = scmp.ne.s32.totalorder %s189, %s203
      %p205 = scmp.eq.s32.totalorder %s22, 0
      %p206 = por %p204, %p205
      %p207 = scmp.le.s32.totalorder 1, %s16
      %p208 = scmp.lt.s32.totalorder %s16, 3
      %p209 = pnand %p207, %p208
      %p210 = pneg %p209
      // Predicated region
      $region9: #{tpu_custom_call.1} parent=5 // pred_check
        _
      $region10: #{tpu_custom_call.1} parent=5 // pred_check_branch
        %212 = sbr.rel (%p209) target = $region12
      $region11: #{tpu_custom_call.1} parent=5 // pred_region
        %s213 = ssub.s32 %s16, 1
        // Predicated region
        $region13: #{tpu_custom_call.1} parent=11 // pred_check
          %p214 = pneg %p115
        $region14: #{tpu_custom_call.1} parent=11 // pred_check_branch
          %216 = sbr.rel (%p214) target = $region16
        $region15: #{tpu_custom_call.1} parent=11 // pred_region
          _
        $region16: #{tpu_custom_call.1} parent=11 // pred_fallthru
          _
        // Predicated region
        $region17: #{tpu_custom_call.1} parent=11 // pred_check
          %p217 = pneg %p136
        $region18: #{tpu_custom_call.1} parent=11 // pred_check_branch
          %219 = sbr.rel (%p217) target = $region20
        $region19: #{tpu_custom_call.1} parent=11 // pred_region
          _
        $region20: #{tpu_custom_call.1} parent=11 // pred_fallthru
          _
        // Predicated region
        $region21: #{tpu_custom_call.1} parent=11 // pred_check
          %p220 = pneg %p157
        $region22: #{tpu_custom_call.1} parent=11 // pred_check_branch
          %222 = sbr.rel (%p220) target = $region24
        $region23: #{tpu_custom_call.1} parent=11 // pred_region
          _
        $region24: #{tpu_custom_call.1} parent=11 // pred_fallthru
          _
        // Predicated region
        $region25: #{tpu_custom_call.1} parent=11 // pred_check
          %p223 = pneg %p178
        $region26: #{tpu_custom_call.1} parent=11 // pred_check_branch
          %225 = sbr.rel (%p223) target = $region28
        $region27: #{tpu_custom_call.1} parent=11 // pred_region
          _
        $region28: #{tpu_custom_call.1} parent=11 // pred_fallthru
          _
      $region12: #{tpu_custom_call.1} parent=5 // pred_fallthru
        _
      %p226 = scmp.lt.s32.totalorder %s16, 2
      // Predicated region
      $region29: #{tpu_custom_call.1} parent=5 // pred_check
        %p227 = pneg %p226
      $region30: #{tpu_custom_call.1} parent=5 // pred_check_branch
        %229 = sbr.rel (%p227) target = $region32
      $region31: #{tpu_custom_call.1} parent=5 // pred_region
        // Predicated region
        $region33: #{tpu_custom_call.1} parent=31 // pred_check
          %p230 = pneg %p36
        $region34: #{tpu_custom_call.1} parent=31 // pred_check_branch
          %232 = sbr.rel (%p230) target = $region36
        $region35: #{tpu_custom_call.1} parent=31 // pred_region
          %p233 = scmp.lt.s32.totalorder %s16, 1
          %s234 = scalar_select %p233, %s16, 1
          %s235 = scalar_lea.vmem %s0, %s234
        $region36: #{tpu_custom_call.1} parent=31 // pred_fallthru
          _
        // Predicated region
        $region37: #{tpu_custom_call.1} parent=31 // pred_check
          %p236 = pneg %p62
        $region38: #{tpu_custom_call.1} parent=31 // pred_check_branch
          %238 = sbr.rel (%p236) target = $region40
        $region39: #{tpu_custom_call.1} parent=31 // pred_region
          %s239 = smul.u32 16, %s16
          %p240 = scmp.lt.s32.totalorder %s239, 31
          %s241 = scalar_select %p240, %s239, 31
          %s242 = smul.addr %s241, 8
          %s243 = scalar_lea.vmem %s1, %s242
          %s244 = smul.u32 16, %s16
        $region40: #{tpu_custom_call.1} parent=31 // pred_fallthru
          _
        // Predicated region
        $region41: #{tpu_custom_call.1} parent=31 // pred_check
          %p245 = pneg %p88
        $region42: #{tpu_custom_call.1} parent=31 // pred_check_branch
          %247 = sbr.rel (%p245) target = $region44
        $region43: #{tpu_custom_call.1} parent=31 // pred_region
          %s248 = smul.u32 16, %s16
          %p249 = scmp.lt.s32.totalorder %s248, 31
          %s250 = scalar_select %p249, %s248, 31
          %s251 = smul.addr %s250, 4
          %s252 = scalar_lea.vmem %s2, %s251
          %s253 = smul.u32 16, %s16
        $region44: #{tpu_custom_call.1} parent=31 // pred_fallthru
          _
      $region32: #{tpu_custom_call.1} parent=5 // pred_fallthru
        _
      %p254 = scmp.le.s32.totalorder 1, %s16
      %p255 = scmp.lt.s32.totalorder %s16, 3
      %p256 = pnand %p254, %p255
      %p257 = pneg %p256
      // Predicated region
      $region45: #{tpu_custom_call.1} parent=5 // pred_check
        _
      $region46: #{tpu_custom_call.1} parent=5 // pred_check_branch
        %259 = sbr.rel (%p256) target = $region48
      $region47: #{tpu_custom_call.1} parent=5 // pred_region
        %s260 = ssub.s32 %s16, 1
        %p261 = scmp.lt.s32.totalorder %s21, 1
        %s262 = scalar_select %p261, %s21, 1
        %s263 = scalar_lea.vmem %s0, %s262
        %p264 = pneg %p42
        %p265 = pneg %p39
        %s266 = smul.u32 16, %s21
        %p267 = scmp.lt.s32.totalorder %s266, 31
        %s268 = scalar_select %p267, %s266, 31
        %s269 = smul.addr %s268, 8
        %s270 = scalar_lea.vmem %s1, %s269
        %p271 = pneg %p68
        %p272 = pneg %p65
        %s273 = smul.u32 16, %s21
        %p274 = scmp.lt.s32.totalorder %s273, 31
        %s275 = scalar_select %p274, %s273, 31
        %s276 = smul.addr %s275, 4
        %s277 = scalar_lea.vmem %s2, %s276
        %p278 = pneg %p94
        %p279 = pneg %p91
        %p280 = pneg %p115
        %p281 = pneg %p112
        %p282 = pneg %p136
        %p283 = pneg %p133
        %p284 = pneg %p157
        %p285 = pneg %p154
        %p286 = pneg %p178
        %p287 = pneg %p175
        %p288 = pneg %p199
        %p289 = pneg %p196
        %p290 = scmp.lt.s32.totalorder %s21, 1
        %s291 = scalar_select %p290, %s21, 1
        %s292 = scalar_lea.vmem %s0, %s291
        %s293 = smul.u32 16, %s21
        %p294 = scmp.lt.s32.totalorder %s293, 31
        %s295 = scalar_select %p294, %s293, 31
        %s296 = smul.addr %s295, 8
        %s297 = scalar_lea.vmem %s1, %s296
        %s298 = smul.u32 16, %s21
        %s299 = smul.u32 16, %s21
        %p300 = scmp.lt.s32.totalorder %s299, 31
        %s301 = scalar_select %p300, %s299, 31
        %s302 = smul.addr %s301, 4
        %s303 = scalar_lea.vmem %s2, %s302
        %s304 = smul.u32 16, %s21
        %p306 = scmp.eq.s32.totalorder %s21, 0
        // Predicated region
        $region49: #{tpu_custom_call.1} parent=47 // pred_check
          %p307 = pneg %p306
        $region50: #{tpu_custom_call.1} parent=47 // pred_check_branch
          %309 = sbr.rel (%p307) target = $region52
        $region51: #{tpu_custom_call.1} parent=47 // pred_region
          %vm310 = vcmask 261120
          %311 = vst.msk [vmem:[#allocation2] sm:$0xff] %vm310, 0.0
          %312 = vst.msk [vmem:[#allocation2 + $0x8] sm:$0xff] %vm310, 0.0
          %313 = vst.msk [vmem:[#allocation2 + $0x10] sm:$0xff] %vm310, 0.0
          %314 = vst.msk [vmem:[#allocation2 + $0x18] sm:$0xff] %vm310, 0.0
          %315 = vst.msk [vmem:[#allocation2 + $0x20] sm:$0xff] %vm310, 0.0
          %316 = vst.msk [vmem:[#allocation2 + $0x28] sm:$0xff] %vm310, 0.0
          %317 = vst.msk [vmem:[#allocation2 + $0x30] sm:$0xff] %vm310, 0.0
          %318 = vst.msk [vmem:[#allocation2 + $0x38] sm:$0xff] %vm310, 0.0
        $region52: #{tpu_custom_call.1} parent=47 // pred_fallthru
          _
        %v319 = vld [vmem:[%s297] sm:$0xff]
        %v320 = vld [vmem:[%s297 + $0x8] sm:$0xff]
        %v321 = vld [vmem:[%s297 + $0x10] sm:$0xff]
        %v322 = vld [vmem:[%s297 + $0x18] sm:$0xff]
        %v323 = vld [vmem:[%s297 + $0x20] sm:$0xff]
        %v324 = vld [vmem:[%s297 + $0x28] sm:$0xff]
        %v325 = vld [vmem:[%s297 + $0x30] sm:$0xff]
        %v326 = vld [vmem:[%s297 + $0x38] sm:$0xff]
        %v327 = vld [vmem:[%s297 + $0x40] sm:$0xff]
        %v328 = vld [vmem:[%s297 + $0x48] sm:$0xff]
        %v329 = vld [vmem:[%s297 + $0x50] sm:$0xff]
        %v330 = vld [vmem:[%s297 + $0x58] sm:$0xff]
        %v331 = vld [vmem:[%s297 + $0x60] sm:$0xff]
        %v332 = vld [vmem:[%s297 + $0x68] sm:$0xff]
        %v333 = vld [vmem:[%s297 + $0x70] sm:$0xff]
        %v334 = vld [vmem:[%s297 + $0x78] sm:$0xff]
        %v335 = vld [vmem:[%s303] sm:$0xf]
        %v336 = vld [vmem:[%s303 + $0x4] sm:$0xf]
        %v337 = vld [vmem:[%s303 + $0x8] sm:$0xf]
        %v338 = vld [vmem:[%s303 + $0xc] sm:$0xf]
        %v339 = vld [vmem:[%s303 + $0x10] sm:$0xf]
        %v340 = vld [vmem:[%s303 + $0x14] sm:$0xf]
        %v341 = vld [vmem:[%s303 + $0x18] sm:$0xf]
        %v342 = vld [vmem:[%s303 + $0x1c] sm:$0xf]
        %v343 = vld [vmem:[%s303 + $0x20] sm:$0xf]
        %v344 = vld [vmem:[%s303 + $0x24] sm:$0xf]
        %v345 = vld [vmem:[%s303 + $0x28] sm:$0xf]
        %v346 = vld [vmem:[%s303 + $0x2c] sm:$0xf]
        %v347 = vld [vmem:[%s303 + $0x30] sm:$0xf]
        %v348 = vld [vmem:[%s303 + $0x34] sm:$0xf]
        %v349 = vld [vmem:[%s303 + $0x38] sm:$0xf]
        %v350 = vld [vmem:[%s303 + $0x3c] sm:$0xf]
        %v351 = vld [vmem:[%s3] sm:$0xf]
        %v352 = vld [vmem:[%s3 + $0x4] sm:$0xf]
        %v369 = vunpack.c.l.b16 %v335
        %v370 = vunpack.c.l.b16 %v336
        %v371 = vunpack.c.l.b16 %v337
        %v372 = vunpack.c.l.b16 %v338
        %v373 = vunpack.c.l.b16 %v339
        %v374 = vunpack.c.l.b16 %v340
        %v375 = vunpack.c.l.b16 %v341
        %v376 = vunpack.c.l.b16 %v342
        %v377 = vunpack.c.l.b16 %v343
        %v378 = vunpack.c.l.b16 %v344
        %v379 = vunpack.c.l.b16 %v345
        %v380 = vunpack.c.l.b16 %v346
        %v381 = vunpack.c.l.b16 %v347
        %v382 = vunpack.c.l.b16 %v348
        %v383 = vunpack.c.l.b16 %v349
        %v384 = vunpack.c.l.b16 %v350
        %v385 = vpack.c.b16 %v370, %v369
        %v386 = vpack.c.b16 %v372, %v371
        %v387 = vpack.c.b16 %v374, %v373
        %v388 = vpack.c.b16 %v376, %v375
        %v389 = vpack.c.b16 %v378, %v377
        %v390 = vpack.c.b16 %v380, %v379
        %v391 = vpack.c.b16 %v382, %v381
        %v392 = vpack.c.b16 %v384, %v383
        %v395 = vunpack.c.l.b16 %v351
        %v396 = vunpack.c.l.b16 %v352
        %v397 = vpack.c.b16 %v396, %v395
        %vm399 = vcmask 130048
        %v401 = vsel %vm399, %v385, 0
        %v404 = vsel %vm399, %v386, 0
        %v407 = vsel %vm399, %v387, 0
        %v410 = vsel %vm399, %v388, 0
        %v413 = vsel %vm399, %v389, 0
        %v416 = vsel %vm399, %v390, 0
        %v419 = vsel %vm399, %v391, 0
        %v422 = vsel %vm399, %v392, 0
        %424 = vmatprep.subr.bf16.mxu0 0
        %425 = vmatpush1.bf16.msra.mxu0 %v397
        %426 = vmatprep.subr.bf16.mxu0 0
        %427 = vmatpush1.bf16.msra.mxu0 0
        %428 = vmatprep.subr.bf16.mxu0 0
        %429 = vmatpush1.bf16.msra.mxu0 0
        %430 = vmatprep.subr.bf16.mxu0 0
        %431 = vmatpush1.bf16.msra.mxu0 0
        %432 = vmatprep.subr.bf16.mxu0 0
        %433 = vmatpush1.bf16.msra.mxu0 0
        %434 = vmatprep.subr.bf16.mxu0 0
        %435 = vmatpush1.bf16.msra.mxu0 0
        %436 = vmatprep.subr.bf16.mxu0 0
        %437 = vmatpush1.bf16.msra.mxu0 0
        %438 = vmatprep.subr.bf16.mxu0 0
        %439 = vmatpush1.bf16.msra.mxu0 0
        %440 = vmatprep.subr.bf16.mxu0 0
        %441 = vmatpush1.bf16.msra.mxu0 0
        %442 = vmatprep.subr.bf16.mxu0 0
        %443 = vmatpush1.bf16.msra.mxu0 0
        %444 = vmatprep.subr.bf16.mxu0 0
        %445 = vmatpush1.bf16.msra.mxu0 0
        %446 = vmatprep.subr.bf16.mxu0 0
        %447 = vmatpush1.bf16.msra.mxu0 0
        %448 = vmatprep.subr.bf16.mxu0 0
        %449 = vmatpush1.bf16.msra.mxu0 0
        %450 = vmatprep.subr.bf16.mxu0 0
        %451 = vmatpush1.bf16.msra.mxu0 0
        %452 = vmatprep.subr.bf16.mxu0 0
        %453 = vmatpush1.bf16.msra.mxu0 0
        %454 = vmatprep.subr.bf16.mxu0 0
        %455 = vmatpush1.bf16.msra.mxu0 0
        %456 = vmatprep.mubr.bf16.mxu0 0
        %457 = vmatmul.mubr.bf16.gmra.mrb[0].mxu0 %v401
        %v458 = vpop.f32.mrb[0].mxu0
        %v459 = vadd.f32 0.0, %v458
        %v460 = vpop.f32.mrb[0].mxu0
        %v461 = vpop.f32.mrb[0].mxu0
        %v462 = vadd.f32 0.0, %v461
        %v463 = vpop.f32.mrb[0].mxu0
        %464 = vmatprep.mubr.bf16.mxu0 0
        %465 = vmatmul.mubr.bf16.gmra.mrb[0].mxu0 %v404
        %v466 = vpop.f32.mrb[0].mxu0
        %v467 = vadd.f32 0.0, %v466
        %v468 = vpop.f32.mrb[0].mxu0
        %v469 = vpop.f32.mrb[0].mxu0
        %v470 = vadd.f32 0.0, %v469
        %v471 = vpop.f32.mrb[0].mxu0
        %472 = vmatprep.mubr.bf16.mxu0 0
        %473 = vmatmul.mubr.bf16.gmra.mrb[0].mxu0 %v407
        %v474 = vpop.f32.mrb[0].mxu0
        %v475 = vadd.f32 0.0, %v474
        %v476 = vpop.f32.mrb[0].mxu0
        %v477 = vpop.f32.mrb[0].mxu0
        %v478 = vadd.f32 0.0, %v477
        %v479 = vpop.f32.mrb[0].mxu0
        %480 = vmatprep.mubr.bf16.mxu0 0
        %481 = vmatmul.mubr.bf16.gmra.mrb[0].mxu0 %v410
        %v482 = vpop.f32.mrb[0].mxu0
        %v483 = vadd.f32 0.0, %v482
        %v484 = vpop.f32.mrb[0].mxu0
        %v485 = vpop.f32.mrb[0].mxu0
        %v486 = vadd.f32 0.0, %v485
        %v487 = vpop.f32.mrb[0].mxu0
        %488 = vmatprep.mubr.bf16.mxu0 0
        %489 = vmatmul.mubr.bf16.gmra.mrb[0].mxu0 %v413
        %v490 = vpop.f32.mrb[0].mxu0
        %v491 = vadd.f32 0.0, %v490
        %v492 = vpop.f32.mrb[0].mxu0
        %v493 = vpop.f32.mrb[0].mxu0
        %v494 = vadd.f32 0.0, %v493
        %v495 = vpop.f32.mrb[0].mxu0
        %496 = vmatprep.mubr.bf16.mxu0 0
        %497 = vmatmul.mubr.bf16.gmra.mrb[0].mxu0 %v416
        %v498 = vpop.f32.mrb[0].mxu0
        %v499 = vadd.f32 0.0, %v498
        %v500 = vpop.f32.mrb[0].mxu0
        %v501 = vpop.f32.mrb[0].mxu0
        %v502 = vadd.f32 0.0, %v501
        %v503 = vpop.f32.mrb[0].mxu0
        %504 = vmatprep.mubr.bf16.mxu0 0
        %505 = vmatmul.mubr.bf16.gmra.mrb[0].mxu0 %v419
        %v506 = vpop.f32.mrb[0].mxu0
        %v507 = vadd.f32 0.0, %v506
        %v508 = vpop.f32.mrb[0].mxu0
        %v509 = vpop.f32.mrb[0].mxu0
        %v510 = vadd.f32 0.0, %v509
        %v511 = vpop.f32.mrb[0].mxu0
        %512 = vmatprep.mubr.bf16.mxu0 0
        %513 = vmatmul.mubr.bf16.gmra.mrb[0].mxu0 %v422
        %v514 = vpop.f32.mrb[0].mxu0
        %v515 = vadd.f32 0.0, %v514
        %v516 = vpop.f32.mrb[0].mxu0
        %v517 = vpop.f32.mrb[0].mxu0
        %v518 = vadd.f32 0.0, %v517
        %v519 = vpop.f32.mrb[0].mxu0
        %520 = vdwg.mxu0
        %v521 = vadd.f32 %v319, %v459
        %v522 = vadd.f32 %v320, %v462
        %v523 = vadd.f32 %v321, %v467
        %v524 = vadd.f32 %v322, %v470
        %v525 = vadd.f32 %v323, %v475
        %v526 = vadd.f32 %v324, %v478
        %v527 = vadd.f32 %v325, %v483
        %v528 = vadd.f32 %v326, %v486
        %v529 = vadd.f32 %v327, %v491
        %v530 = vadd.f32 %v328, %v494
        %v531 = vadd.f32 %v329, %v499
        %v532 = vadd.f32 %v330, %v502
        %v533 = vadd.f32 %v331, %v507
        %v534 = vadd.f32 %v332, %v510
        %v535 = vadd.f32 %v333, %v515
        %v536 = vadd.f32 %v334, %v518
        %v537 = vsub.f32 0.0, %v521
        %v538 = vsub.f32 0.0, %v522
        %v539 = vsub.f32 0.0, %v523
        %v540 = vsub.f32 0.0, %v524
        %v541 = vsub.f32 0.0, %v525
        %v542 = vsub.f32 0.0, %v526
        %v543 = vsub.f32 0.0, %v527
        %v544 = vsub.f32 0.0, %v528
        %v545 = vsub.f32 0.0, %v529
        %v546 = vsub.f32 0.0, %v530
        %v547 = vsub.f32 0.0, %v531
        %v548 = vsub.f32 0.0, %v532
        %v549 = vsub.f32 0.0, %v533
        %v550 = vsub.f32 0.0, %v534
        %v551 = vsub.f32 0.0, %v535
        %v552 = vsub.f32 0.0, %v536
        %v553 = vmul.f32 %v537, 1.442695
        %v554 = vpow.pop %v553
        %v555 = vmul.f32 %v538, 1.442695
        %v556 = vpow.pop %v555
        %v557 = vmul.f32 %v539, 1.442695
        %v558 = vpow.pop %v557
        %v559 = vmul.f32 %v540, 1.442695
        %v560 = vpow.pop %v559
        %v561 = vmul.f32 %v541, 1.442695
        %v562 = vpow.pop %v561
        %v563 = vmul.f32 %v542, 1.442695
        %v564 = vpow.pop %v563
        %v565 = vmul.f32 %v543, 1.442695
        %v566 = vpow.pop %v565
        %v567 = vmul.f32 %v544, 1.442695
        %v568 = vpow.pop %v567
        %v569 = vmul.f32 %v545, 1.442695
        %v570 = vpow.pop %v569
        %v571 = vmul.f32 %v546, 1.442695
        %v572 = vpow.pop %v571
        %v573 = vmul.f32 %v547, 1.442695
        %v574 = vpow.pop %v573
        %v575 = vmul.f32 %v548, 1.442695
        %v576 = vpow.pop %v575
        %v577 = vmul.f32 %v549, 1.442695
        %v578 = vpow.pop %v577
        %v579 = vmul.f32 %v550, 1.442695
        %v580 = vpow.pop %v579
        %v581 = vmul.f32 %v551, 1.442695
        %v582 = vpow.pop %v581
        %v583 = vmul.f32 %v552, 1.442695
        %v584 = vpow.pop %v583
        %v585 = vadd.f32 %v554, 1.0
        %v586 = vadd.f32 %v556, 1.0
        %v587 = vadd.f32 %v558, 1.0
        %v588 = vadd.f32 %v560, 1.0
        %v589 = vadd.f32 %v562, 1.0
        %v590 = vadd.f32 %v564, 1.0
        %v591 = vadd.f32 %v566, 1.0
        %v592 = vadd.f32 %v568, 1.0
        %v593 = vadd.f32 %v570, 1.0
        %v594 = vadd.f32 %v572, 1.0
        %v595 = vadd.f32 %v574, 1.0
        %v596 = vadd.f32 %v576, 1.0
        %v597 = vadd.f32 %v578, 1.0
        %v598 = vadd.f32 %v580, 1.0
        %v599 = vadd.f32 %v582, 1.0
        %v600 = vadd.f32 %v584, 1.0
        %v601 = vrcp.pop %v585
        %v602 = vrcp.pop %v586
        %v603 = vrcp.pop %v587
        %v604 = vrcp.pop %v588
        %v605 = vrcp.pop %v589
        %v606 = vrcp.pop %v590
        %v607 = vrcp.pop %v591
        %v608 = vrcp.pop %v592
        %v609 = vrcp.pop %v593
        %v610 = vrcp.pop %v594
        %v611 = vrcp.pop %v595
        %v612 = vrcp.pop %v596
        %v613 = vrcp.pop %v597
        %v614 = vrcp.pop %v598
        %v615 = vrcp.pop %v599
        %v616 = vrcp.pop %v600
        %v617 = vmax.f32 %v521, 0.0
        %v618 = vmax.f32 %v522, 0.0
        %v619 = vmax.f32 %v523, 0.0
        %v620 = vmax.f32 %v524, 0.0
        %v621 = vmax.f32 %v525, 0.0
        %v622 = vmax.f32 %v526, 0.0
        %v623 = vmax.f32 %v527, 0.0
        %v624 = vmax.f32 %v528, 0.0
        %v625 = vmax.f32 %v529, 0.0
        %v626 = vmax.f32 %v530, 0.0
        %v627 = vmax.f32 %v531, 0.0
        %v628 = vmax.f32 %v532, 0.0
        %v629 = vmax.f32 %v533, 0.0
        %v630 = vmax.f32 %v534, 0.0
        %v631 = vmax.f32 %v535, 0.0
        %v632 = vmax.f32 %v536, 0.0
        %v633 = vand.u32 2147483647, %v521
        %v634 = vand.u32 2147483647, %v522
        %v635 = vand.u32 2147483647, %v523
        %v636 = vand.u32 2147483647, %v524
        %v637 = vand.u32 2147483647, %v525
        %v638 = vand.u32 2147483647, %v526
        %v639 = vand.u32 2147483647, %v527
        %v640 = vand.u32 2147483647, %v528
        %v641 = vand.u32 2147483647, %v529
        %v642 = vand.u32 2147483647, %v530
        %v643 = vand.u32 2147483647, %v531
        %v644 = vand.u32 2147483647, %v532
        %v645 = vand.u32 2147483647, %v533
        %v646 = vand.u32 2147483647, %v534
        %v647 = vand.u32 2147483647, %v535
        %v648 = vand.u32 2147483647, %v536
        %v649 = vsub.f32 0.0, %v633
        %v650 = vsub.f32 0.0, %v634
        %v651 = vsub.f32 0.0, %v635
        %v652 = vsub.f32 0.0, %v636
        %v653 = vsub.f32 0.0, %v637
        %v654 = vsub.f32 0.0, %v638
        %v655 = vsub.f32 0.0, %v639
        %v656 = vsub.f32 0.0, %v640
        %v657 = vsub.f32 0.0, %v641
        %v658 = vsub.f32 0.0, %v642
        %v659 = vsub.f32 0.0, %v643
        %v660 = vsub.f32 0.0, %v644
        %v661 = vsub.f32 0.0, %v645
        %v662 = vsub.f32 0.0, %v646
        %v663 = vsub.f32 0.0, %v647
        %v664 = vsub.f32 0.0, %v648
        %v665 = vmul.f32 %v649, 1.442695
        %v666 = vpow.pop %v665
        %v667 = vmul.f32 %v650, 1.442695
        %v668 = vpow.pop %v667
        %v669 = vmul.f32 %v651, 1.442695
        %v670 = vpow.pop %v669
        %v671 = vmul.f32 %v652, 1.442695
        %v672 = vpow.pop %v671
        %v673 = vmul.f32 %v653, 1.442695
        %v674 = vpow.pop %v673
        %v675 = vmul.f32 %v654, 1.442695
        %v676 = vpow.pop %v675
        %v677 = vmul.f32 %v655, 1.442695
        %v678 = vpow.pop %v677
        %v679 = vmul.f32 %v656, 1.442695
        %v680 = vpow.pop %v679
        %v681 = vmul.f32 %v657, 1.442695
        %v682 = vpow.pop %v681
        %v683 = vmul.f32 %v658, 1.442695
        %v684 = vpow.pop %v683
        %v685 = vmul.f32 %v659, 1.442695
        %v686 = vpow.pop %v685
        %v687 = vmul.f32 %v660, 1.442695
        %v688 = vpow.pop %v687
        %v689 = vmul.f32 %v661, 1.442695
        %v690 = vpow.pop %v689
        %v691 = vmul.f32 %v662, 1.442695
        %v692 = vpow.pop %v691
        %v693 = vmul.f32 %v663, 1.442695
        %v694 = vpow.pop %v693
        %v695 = vmul.f32 %v664, 1.442695
        %v696 = vpow.pop %v695
        %v697 = vadd.f32 %v666, 1.0
        %v698 = vadd.f32 %v668, 1.0
        %v699 = vadd.f32 %v670, 1.0
        %v700 = vadd.f32 %v672, 1.0
        %v701 = vadd.f32 %v674, 1.0
        %v702 = vadd.f32 %v676, 1.0
        %v703 = vadd.f32 %v678, 1.0
        %v704 = vadd.f32 %v680, 1.0
        %v705 = vadd.f32 %v682, 1.0
        %v706 = vadd.f32 %v684, 1.0
        %v707 = vadd.f32 %v686, 1.0
        %v708 = vadd.f32 %v688, 1.0
        %v709 = vadd.f32 %v690, 1.0
        %v710 = vadd.f32 %v692, 1.0
        %v711 = vadd.f32 %v694, 1.0
        %v712 = vadd.f32 %v696, 1.0
        %v713 = vlog2.pop %v697
        %v714 = vmul.f32 %v713, 0.6931472
        %v715 = vlog2.pop %v698
        %v716 = vmul.f32 %v715, 0.6931472
        %v717 = vlog2.pop %v699
        %v718 = vmul.f32 %v717, 0.6931472
        %v719 = vlog2.pop %v700
        %v720 = vmul.f32 %v719, 0.6931472
        %v721 = vlog2.pop %v701
        %v722 = vmul.f32 %v721, 0.6931472
        %v723 = vlog2.pop %v702
        %v724 = vmul.f32 %v723, 0.6931472
        %v725 = vlog2.pop %v703
        %v726 = vmul.f32 %v725, 0.6931472
        %v727 = vlog2.pop %v704
        %v728 = vmul.f32 %v727, 0.6931472
        %v729 = vlog2.pop %v705
        %v730 = vmul.f32 %v729, 0.6931472
        %v731 = vlog2.pop %v706
        %v732 = vmul.f32 %v731, 0.6931472
        %v733 = vlog2.pop %v707
        %v734 = vmul.f32 %v733, 0.6931472
        %v735 = vlog2.pop %v708
        %v736 = vmul.f32 %v735, 0.6931472
        %v737 = vlog2.pop %v709
        %v738 = vmul.f32 %v737, 0.6931472
        %v739 = vlog2.pop %v710
        %v740 = vmul.f32 %v739, 0.6931472
        %v741 = vlog2.pop %v711
        %v742 = vmul.f32 %v741, 0.6931472
        %v743 = vlog2.pop %v712
        %v744 = vmul.f32 %v743, 0.6931472
        %v745 = vadd.f32 %v617, %v714
        %v746 = vadd.f32 %v618, %v716
        %v747 = vadd.f32 %v619, %v718
        %v748 = vadd.f32 %v620, %v720
        %v749 = vadd.f32 %v621, %v722
        %v750 = vadd.f32 %v622, %v724
        %v751 = vadd.f32 %v623, %v726
        %v752 = vadd.f32 %v624, %v728
        %v753 = vadd.f32 %v625, %v730
        %v754 = vadd.f32 %v626, %v732
        %v755 = vadd.f32 %v627, %v734
        %v756 = vadd.f32 %v628, %v736
        %v757 = vadd.f32 %v629, %v738
        %v758 = vadd.f32 %v630, %v740
        %v759 = vadd.f32 %v631, %v742
        %v760 = vadd.f32 %v632, %v744
        %777 = vrot.lane.b32.xlu0 %v745, 96
        %v778 = vpop.permute.xlu0 %777
        %779 = vrot.lane.b32.xlu0 %v746, 96
        %v780 = vpop.permute.xlu0 %779
        %781 = vrot.lane.b32.xlu0 %v747, 96
        %v782 = vpop.permute.xlu0 %781
        %783 = vrot.lane.b32.xlu0 %v748, 96
        %v784 = vpop.permute.xlu0 %783
        %785 = vrot.lane.b32.xlu0 %v749, 96
        %v786 = vpop.permute.xlu0 %785
        %787 = vrot.lane.b32.xlu0 %v750, 96
        %v788 = vpop.permute.xlu0 %787
        %789 = vrot.lane.b32.xlu0 %v751, 96
        %v790 = vpop.permute.xlu0 %789
        %791 = vrot.lane.b32.xlu0 %v752, 96
        %v792 = vpop.permute.xlu0 %791
        %793 = vrot.lane.b32.xlu0 %v753, 96
        %v794 = vpop.permute.xlu0 %793
        %795 = vrot.lane.b32.xlu0 %v754, 96
        %v796 = vpop.permute.xlu0 %795
        %797 = vrot.lane.b32.xlu0 %v755, 96
        %v798 = vpop.permute.xlu0 %797
        %799 = vrot.lane.b32.xlu0 %v756, 96
        %v800 = vpop.permute.xlu0 %799
        %801 = vrot.lane.b32.xlu0 %v757, 96
        %v802 = vpop.permute.xlu0 %801
        %803 = vrot.lane.b32.xlu0 %v758, 96
        %v804 = vpop.permute.xlu0 %803
        %805 = vrot.lane.b32.xlu0 %v759, 96
        %v806 = vpop.permute.xlu0 %805
        %807 = vrot.lane.b32.xlu0 %v760, 96
        %v808 = vpop.permute.xlu0 %807
        %v825 = vmul.f32 %v601, %v778
        %v826 = vmul.f32 %v602, %v780
        %v827 = vmul.f32 %v603, %v782
        %v828 = vmul.f32 %v604, %v784
        %v829 = vmul.f32 %v605, %v786
        %v830 = vmul.f32 %v606, %v788
        %v831 = vmul.f32 %v607, %v790
        %v832 = vmul.f32 %v608, %v792
        %v833 = vmul.f32 %v609, %v794
        %v834 = vmul.f32 %v610, %v796
        %v835 = vmul.f32 %v611, %v798
        %v836 = vmul.f32 %v612, %v800
        %v837 = vmul.f32 %v613, %v802
        %v838 = vmul.f32 %v614, %v804
        %v839 = vmul.f32 %v615, %v806
        %v840 = vmul.f32 %v616, %v808
        %v841 = vlaneseq
        %v842 = vshrl.u32 %v841, 7
        %v843 = vadd.s32 %v842, 8
        %v844 = vadd.s32 %v842, 16
        %v845 = vadd.s32 %v842, 24
        %v846 = vadd.s32 %v842, 32
        %v847 = vadd.s32 %v842, 40
        %v848 = vadd.s32 %v842, 48
        %v849 = vadd.s32 %v842, 56
        %v850 = vld [vmem:[%s292] sm:$0x1]
        %v851 = vlaneseq
        %v852 = vshrl.u32 %v851, 7
        %v853 = vsub.s32 0, %v852
        %v854 = vrot.slane %v850, %v853
        %vm855 = vcmp.eq.s32.totalorder %v842, %v854
        %vm856 = vcmp.eq.s32.totalorder %v843, %v854
        %vm857 = vcmp.eq.s32.totalorder %v844, %v854
        %vm858 = vcmp.eq.s32.totalorder %v845, %v854
        %vm859 = vcmp.eq.s32.totalorder %v846, %v854
        %vm860 = vcmp.eq.s32.totalorder %v847, %v854
        %vm861 = vcmp.eq.s32.totalorder %v848, %v854
        %vm862 = vcmp.eq.s32.totalorder %v849, %v854
        %v863 = vsel %vm855, 1, 0
        %v864 = vsel %vm856, 1, 0
        %v865 = vsel %vm857, 1, 0
        %v866 = vsel %vm858, 1, 0
        %v867 = vsel %vm859, 1, 0
        %v868 = vsel %vm860, 1, 0
        %v869 = vsel %vm861, 1, 0
        %v870 = vsel %vm862, 1, 0
        %v871 = vcvt.s32.f32 %v863
        %v872 = vcvt.s32.f32 %v864
        %v873 = vcvt.s32.f32 %v865
        %v874 = vcvt.s32.f32 %v866
        %v875 = vcvt.s32.f32 %v867
        %v876 = vcvt.s32.f32 %v868
        %v877 = vcvt.s32.f32 %v869
        %v878 = vcvt.s32.f32 %v870
        %v879 = vld [vmem:[#allocation2] sm:$0xff]
        %v880 = vld [vmem:[#allocation2 + $0x8] sm:$0xff]
        %v881 = vld [vmem:[#allocation2 + $0x10] sm:$0xff]
        %v882 = vld [vmem:[#allocation2 + $0x18] sm:$0xff]
        %v883 = vld [vmem:[#allocation2 + $0x20] sm:$0xff]
        %v884 = vld [vmem:[#allocation2 + $0x28] sm:$0xff]
        %v885 = vld [vmem:[#allocation2 + $0x30] sm:$0xff]
        %v886 = vld [vmem:[#allocation2 + $0x38] sm:$0xff]
        %887 = vmatprep.subr.mxu0 0.0
        %888 = vmatpush1.msra.mxu0 %v825
        %889 = vmatprep.subr.mxu0 0.0
        %890 = vmatpush1.msra.mxu0 %v826
        %891 = vmatprep.subr.mxu0 0.0
        %892 = vmatpush1.msra.mxu0 %v827
        %893 = vmatprep.subr.mxu0 0.0
        %894 = vmatpush1.msra.mxu0 %v828
        %895 = vmatprep.subr.mxu0 0.0
        %896 = vmatpush1.msra.mxu0 %v829
        %897 = vmatprep.subr.mxu0 0.0
        %898 = vmatpush1.msra.mxu0 %v830
        %899 = vmatprep.subr.mxu0 0.0
        %900 = vmatpush1.msra.mxu0 %v831
        %901 = vmatprep.subr.mxu0 0.0
        %902 = vmatpush1.msra.mxu0 %v832
        %903 = vmatprep.subr.mxu0 0.0
        %904 = vmatpush1.msra.mxu0 %v833
        %905 = vmatprep.subr.mxu0 0.0
        %906 = vmatpush1.msra.mxu0 %v834
        %907 = vmatprep.subr.mxu0 0.0
        %908 = vmatpush1.msra.mxu0 %v835
        %909 = vmatprep.subr.mxu0 0.0
        %910 = vmatpush1.msra.mxu0 %v836
        %911 = vmatprep.subr.mxu0 0.0
        %912 = vmatpush1.msra.mxu0 %v837
        %913 = vmatprep.subr.mxu0 0.0
        %914 = vmatpush1.msra.mxu0 %v838
        %915 = vmatprep.subr.mxu0 0.0
        %916 = vmatpush1.msra.mxu0 %v839
        %917 = vmatprep.subr.mxu0 0.0
        %918 = vmatpush1.msra.mxu0 %v840
        %919 = vmatprep.subr.mxu0 0.0
        %920 = vmatpush1.msra.mxu0 0.0
        %921 = vmatprep.subr.mxu0 0.0
        %922 = vmatpush1.msra.mxu0 0.0
        %923 = vmatprep.subr.mxu0 0.0
        %924 = vmatpush1.msra.mxu0 0.0
        %925 = vmatprep.subr.mxu0 0.0
        %926 = vmatpush1.msra.mxu0 0.0
        %927 = vmatprep.subr.mxu0 0.0
        %928 = vmatpush1.msra.mxu0 0.0
        %929 = vmatprep.subr.mxu0 0.0
        %930 = vmatpush1.msra.mxu0 0.0
        %931 = vmatprep.subr.mxu0 0.0
        %932 = vmatpush1.msra.mxu0 0.0
        %933 = vmatprep.subr.mxu0 0.0
        %934 = vmatpush1.msra.mxu0 0.0
        %935 = vmatprep.subr.mxu0 0.0
        %936 = vmatpush1.msra.mxu0 0.0
        %937 = vmatprep.subr.mxu0 0.0
        %938 = vmatpush1.msra.mxu0 0.0
        %939 = vmatprep.subr.mxu0 0.0
        %940 = vmatpush1.msra.mxu0 0.0
        %941 = vmatprep.subr.mxu0 0.0
        %942 = vmatpush1.msra.mxu0 0.0
        %943 = vmatprep.subr.mxu0 0.0
        %944 = vmatpush1.msra.mxu0 0.0
        %945 = vmatprep.subr.mxu0 0.0
        %946 = vmatpush1.msra.mxu0 0.0
        %947 = vmatprep.subr.mxu0 0.0
        %948 = vmatpush1.msra.mxu0 0.0
        %949 = vmatprep.subr.mxu0 0.0
        %950 = vmatpush1.msra.mxu0 0.0
        %951 = vmatprep.mubr.f32.mxu0 0.0
        %952 = vmatmul.mubr.f32.gmra.mrb[0].mxu0 %v871
        %v953 = vpop.f32.mrb[0].mxu0
        %v954 = vadd.f32 0.0, %v953
        %v955 = vpop.f32.mrb[0].mxu0
        %956 = vmatprep.mubr.f32.mxu0 0.0
        %957 = vmatmul.mubr.f32.gmra.mrb[0].mxu0 %v872
        %v958 = vpop.f32.mrb[0].mxu0
        %v959 = vadd.f32 0.0, %v958
        %v960 = vpop.f32.mrb[0].mxu0
        %961 = vmatprep.mubr.f32.mxu0 0.0
        %962 = vmatmul.mubr.f32.gmra.mrb[0].mxu0 %v873
        %v963 = vpop.f32.mrb[0].mxu0
        %v964 = vadd.f32 0.0, %v963
        %v965 = vpop.f32.mrb[0].mxu0
        %966 = vmatprep.mubr.f32.mxu0 0.0
        %967 = vmatmul.mubr.f32.gmra.mrb[0].mxu0 %v874
        %v968 = vpop.f32.mrb[0].mxu0
        %v969 = vadd.f32 0.0, %v968
        %v970 = vpop.f32.mrb[0].mxu0
        %971 = vmatprep.mubr.f32.mxu0 0.0
        %972 = vmatmul.mubr.f32.gmra.mrb[0].mxu0 %v875
        %v973 = vpop.f32.mrb[0].mxu0
        %v974 = vadd.f32 0.0, %v973
        %v975 = vpop.f32.mrb[0].mxu0
        %976 = vmatprep.mubr.f32.mxu0 0.0
        %977 = vmatmul.mubr.f32.gmra.mrb[0].mxu0 %v876
        %v978 = vpop.f32.mrb[0].mxu0
        %v979 = vadd.f32 0.0, %v978
        %v980 = vpop.f32.mrb[0].mxu0
        %981 = vmatprep.mubr.f32.mxu0 0.0
        %982 = vmatmul.mubr.f32.gmra.mrb[0].mxu0 %v877
        %v983 = vpop.f32.mrb[0].mxu0
        %v984 = vadd.f32 0.0, %v983
        %v985 = vpop.f32.mrb[0].mxu0
        %986 = vmatprep.mubr.f32.mxu0 0.0
        %987 = vmatmul.mubr.f32.gmra.mrb[0].mxu0 %v878
        %v988 = vpop.f32.mrb[0].mxu0
        %v989 = vadd.f32 0.0, %v988
        %v990 = vpop.f32.mrb[0].mxu0
        %991 = vdwg.mxu0
        %v992 = vadd.f32 %v879, %v954
        %v993 = vadd.f32 %v880, %v959
        %v994 = vadd.f32 %v881, %v964
        %v995 = vadd.f32 %v882, %v969
        %v996 = vadd.f32 %v883, %v974
        %v997 = vadd.f32 %v884, %v979
        %v998 = vadd.f32 %v885, %v984
        %v999 = vadd.f32 %v886, %v989
        %vm1000 = vcmask 261120
        %1001 = vst.msk [vmem:[#allocation2] sm:$0xff] %vm1000, %v992
        %1002 = vst.msk [vmem:[#allocation2 + $0x8] sm:$0xff] %vm1000, %v993
        %1003 = vst.msk [vmem:[#allocation2 + $0x10] sm:$0xff] %vm1000, %v994
        %1004 = vst.msk [vmem:[#allocation2 + $0x18] sm:$0xff] %vm1000, %v995
        %1005 = vst.msk [vmem:[#allocation2 + $0x20] sm:$0xff] %vm1000, %v996
        %1006 = vst.msk [vmem:[#allocation2 + $0x28] sm:$0xff] %vm1000, %v997
        %1007 = vst.msk [vmem:[#allocation2 + $0x30] sm:$0xff] %vm1000, %v998
        %1008 = vst.msk [vmem:[#allocation2 + $0x38] sm:$0xff] %vm1000, %v999
        %p1009 = scmp.eq.s32.totalorder %s21, 1
        // Predicated region
        $region53: #{tpu_custom_call.1} parent=47 // pred_check
          %p1010 = pneg %p1009
        $region54: #{tpu_custom_call.1} parent=47 // pred_check_branch
          %1012 = sbr.rel (%p1010) target = $region56
        $region55: #{tpu_custom_call.1} parent=47 // pred_region
          %v1013 = vld [vmem:[%s4] sm:$0xff]
          %v1014 = vld [vmem:[%s4 + $0x8] sm:$0xff]
          %v1015 = vld [vmem:[%s4 + $0x10] sm:$0xff]
          %v1016 = vld [vmem:[%s4 + $0x18] sm:$0xff]
          %v1017 = vld [vmem:[%s4 + $0x20] sm:$0xff]
          %v1018 = vld [vmem:[%s4 + $0x28] sm:$0xff]
          %v1019 = vld [vmem:[%s4 + $0x30] sm:$0xff]
          %v1020 = vld [vmem:[%s4 + $0x38] sm:$0xff]
          %v1021 = vld [vmem:[#allocation2] sm:$0xff]
          %v1022 = vld [vmem:[#allocation2 + $0x8] sm:$0xff]
          %v1023 = vld [vmem:[#allocation2 + $0x10] sm:$0xff]
          %v1024 = vld [vmem:[#allocation2 + $0x18] sm:$0xff]
          %v1025 = vld [vmem:[#allocation2 + $0x20] sm:$0xff]
          %v1026 = vld [vmem:[#allocation2 + $0x28] sm:$0xff]
          %v1027 = vld [vmem:[#allocation2 + $0x30] sm:$0xff]
          %v1028 = vld [vmem:[#allocation2 + $0x38] sm:$0xff]
          %v1029 = vadd.f32 %v1013, %v1021
          %v1030 = vadd.f32 %v1014, %v1022
          %v1031 = vadd.f32 %v1015, %v1023
          %v1032 = vadd.f32 %v1016, %v1024
          %v1033 = vadd.f32 %v1017, %v1025
          %v1034 = vadd.f32 %v1018, %v1026
          %v1035 = vadd.f32 %v1019, %v1027
          %v1036 = vadd.f32 %v1020, %v1028
          %v1037 = vmax.f32 %v1029, 0.0
          %v1038 = vmax.f32 %v1030, 0.0
          %v1039 = vmax.f32 %v1031, 0.0
          %v1040 = vmax.f32 %v1032, 0.0
          %v1041 = vmax.f32 %v1033, 0.0
          %v1042 = vmax.f32 %v1034, 0.0
          %v1043 = vmax.f32 %v1035, 0.0
          %v1044 = vmax.f32 %v1036, 0.0
          %v1045 = vsel %vm1000, %v1037, 0.0
          %v1046 = vsel %vm1000, %v1038, 0.0
          %v1047 = vadd.f32 %v1045, %v1046
          %v1048 = vsel %vm1000, %v1039, 0.0
          %v1049 = vadd.f32 %v1047, %v1048
          %v1050 = vsel %vm1000, %v1040, 0.0
          %v1051 = vadd.f32 %v1049, %v1050
          %v1052 = vsel %vm1000, %v1041, 0.0
          %v1053 = vadd.f32 %v1051, %v1052
          %v1054 = vsel %vm1000, %v1042, 0.0
          %v1055 = vadd.f32 %v1053, %v1054
          %v1056 = vsel %vm1000, %v1043, 0.0
          %v1057 = vadd.f32 %v1055, %v1056
          %v1058 = vsel %vm1000, %v1044, 0.0
          %v1059 = vadd.f32 %v1057, %v1058
          %v1060 = vrot.slane %v1059, 4
          %v1061 = vadd.f32 %v1059, %v1060
          %v1062 = vrot.slane %v1061, 2
          %v1063 = vadd.f32 %v1061, %v1062
          %v1064 = vrot.slane %v1063, 1
          %v1065 = vadd.f32 %v1063, %v1064
          %v1066 = vld [vmem:[%s5] sm:$0x1]
          %v1067 = vmul.f32 %v1065, %v1066
          %vm1068 = vcmask 253952
          %v1069 = vsel %vm1068, %v1067, 0.0
          %1070 = vadd.xlane.f32.xlu0 %v1069
          %v1071 = vpop.xlane.xlu0 %1070
          %v1072 = vld [vmem:[#allocation3] sm:$0x1]
          %v1073 = vadd.f32 %v1071, %v1072
          %vm1074 = vcmask 0
          %1075 = vst.msk [vmem:[#allocation4] sm:$0x1] %vm1074, %v1073
        $region56: #{tpu_custom_call.1} parent=47 // pred_fallthru
          _
        // Predicated region
        $region57: #{tpu_custom_call.1} parent=47 // pred_check
          %p1076 = pneg %p196
        $region58: #{tpu_custom_call.1} parent=47 // pred_check_branch
          %1078 = sbr.rel (%p1076) target = $region60
        $region59: #{tpu_custom_call.1} parent=47 // pred_region
          %s1080 = ssub.s32 16, 16
          %1081 = vsyncadd [#allocation5], %s1080
          %s1083 = sshll.u32 [#allocation4], 4
          %s1084 = int_to_ptr.vmem [resolvable:$true] %s1083
          %1086 = dma.vmem_to_hbm [thread:$0]  %s1084, 16, %s7, [#allocation5]
        $region60: #{tpu_custom_call.1} parent=47 // pred_fallthru
          _
        // Predicated region
        $region61: #{tpu_custom_call.1} parent=47 // pred_check
          %p1087 = pneg %p196
        $region62: #{tpu_custom_call.1} parent=47 // pred_check_branch
          %1089 = sbr.rel (%p1087) target = $region64
        $region63: #{tpu_custom_call.1} parent=47 // pred_region
          %1090 = dma.done [#allocation5], 16
        $region64: #{tpu_custom_call.1} parent=47 // pred_fallthru
          _
      $region48: #{tpu_custom_call.1} parent=5 // pred_fallthru
        _
      %p1091 = scmp.le.s32.totalorder 2, %s16
      // Predicated region
      $region65: #{tpu_custom_call.1} parent=5 // pred_check
        %p1092 = pneg %p1091
      $region66: #{tpu_custom_call.1} parent=5 // pred_check_branch
        %1094 = sbr.rel (%p1092) target = $region68
      $region67: #{tpu_custom_call.1} parent=5 // pred_region
        %s1095 = ssub.s32 %s16, 2
      $region68: #{tpu_custom_call.1} parent=5 // pred_fallthru
        _
    $region6: #{tpu_custom_call.1} parent=1 // loop_footer
      %s20 = sadd.s32 1, %s16
    $region7: #{tpu_custom_call.1} parent=1 // loop_footer_branch
      %15 = sbr.rel target = $region3
    $region8: #{tpu_custom_call.1} parent=1 // loop_exit
      _
    %1096 = vsyncpa [#allocation5], 1
    %s1097 = scalar_lea.sflag [#allocation5], 1
    %1098 = vsyncpa %s1097, 1

</llo_original>
